<compile_context>
chip_gen: v5e
topology: v5e:2x2
jax: 0.10.0
libtpu: 0.0.40
codegen_flags: <defaults>
</compile_context>

<pallas_src>
import functools
import math

import jax
import jax.numpy as jnp
from jax import lax
from jax.experimental import pallas as pl
from jax.experimental.pallas import tpu as pltpu

D_PAD = 128       # lane-dense embedding width inside the kernel (pad D -> 128)
ROW_BLOCK = 64    # output rows per grid step (multiple of 8 sublanes)

_HASH_MUL = 1103515245
_HASH_ADD = 12345
_HASH_MASK = 0x7FFFFFFF


def _is_pow2(x):
    return x > 0 and (x & (x - 1)) == 0


def _mc_gather_kernel(ids_ref, nb_mask_ref, nb_log2_ref, bs_mask_ref,
                      row_off_ref, table_ref, out_ref, *, row_block):
    """MPZCH-style hash remap (scalar path) + row gather from a VMEM table.

    ids_ref     : SMEM [N_pad]   int32  raw feature values (scalar prefetch)
    nb_mask_ref : SMEM [G]       int32  num_buckets - 1 for this block's table
    nb_log2_ref : SMEM [G]       int32  log2(num_buckets)
    bs_mask_ref : SMEM [G]       int32  bucket_size - 1
    row_off_ref : SMEM [G]       int32  row offset of this block's table
    table_ref   : VMEM [E_total, 128] f32  stacked, lane-padded tables
    out_ref     : VMEM [row_block, 128] f32 gathered embedding rows
    """
    g = pl.program_id(0)
    nb_mask = nb_mask_ref[g]
    nb_log2 = nb_log2_ref[g]
    bs_mask = bs_mask_ref[g]
    row_off = row_off_ref[g]
    bucket_size = bs_mask + jnp.int32(1)
    base = g * row_block

    def body(r, carry):
        raw = ids_ref[base + r]
        # LCG-style mix; int32 wraparound is XLA-defined.
        h = raw * jnp.int32(_HASH_MUL) + jnp.int32(_HASH_ADD)
        h = jnp.bitwise_and(h, jnp.int32(_HASH_MASK))
        # power-of-two specialization: rem/div -> mask/shift (no vector idiv)
        bucket = jnp.bitwise_and(h, nb_mask)
        slot = jnp.bitwise_and(jnp.right_shift(h, nb_log2), bs_mask)
        row = row_off + bucket * bucket_size + slot
        # real gather: one lane-dense row copy per id (no one-hot matmul)
        out_ref[pl.ds(r, 1), :] = table_ref[pl.ds(row, 1), :]
        return carry

    lax.fori_loop(0, row_block, body, 0)


def mc_fused_lookup(ids, nb_mask, nb_log2, bs_mask, row_off, stacked_table,
                    *, row_block=ROW_BLOCK):
    """ids: [N_pad] int32 (N_pad % row_block == 0); stacked_table: [E_total, 128]."""
    n_pad = ids.shape[0]
    e_total, d_pad = stacked_table.shape
    assert n_pad % row_block == 0
    grid = (n_pad // row_block,)
    kernel = functools.partial(_mc_gather_kernel, row_block=row_block)
    return pl.pallas_call(
        kernel,
        out_shape=jax.ShapeDtypeStruct((n_pad, d_pad), jnp.float32),
        grid_spec=pltpu.PrefetchScalarGridSpec(
            num_scalar_prefetch=5,
            grid=grid,
            # table block index is constant across the grid -> DMA'd once,
            # stays VMEM-resident (tables here are small; see TODO above).
            in_specs=[pl.BlockSpec((e_total, d_pad), lambda g, *_: (0, 0))],
            # lane-dense output block: last dim = 128, rows multiple of 8.
            out_specs=pl.BlockSpec((row_block, d_pad), lambda g, *_: (g, 0)),
        ),
        compiler_params=pltpu.CompilerParams(
            dimension_semantics=("parallel",),
        ),
    )(ids, nb_mask, nb_log2, bs_mask, row_off, stacked_table)


def _remap_reference(values, num_buckets, bucket_size):
    """Same stateless remap as the kernel, vectorized in plain JAX (used only
    to populate self.remapped_ids, mirroring the PyTorch module)."""
    h = values.astype(jnp.int32) * jnp.int32(_HASH_MUL) + jnp.int32(_HASH_ADD)
    h = jnp.bitwise_and(h, jnp.int32(_HASH_MASK))
    bucket = jnp.bitwise_and(h, jnp.int32(num_buckets - 1))
    slot = jnp.bitwise_and(
        jnp.right_shift(h, jnp.int32(int(math.log2(num_buckets)))),
        jnp.int32(bucket_size - 1))
    return bucket * jnp.int32(bucket_size) + slot


class McEmbeddingCollectionAdapterJAX:
    """JAX/Pallas analogue of McEmbeddingCollectionAdapter (mpzch, inference path).

    tables: dict table_name -> dict(num_embeddings, embedding_dim,
                                    feature_names, num_buckets)
    """

    def __init__(self, tables, input_hash_size, key, *, row_block=ROW_BLOCK):
        self.input_hash_size = input_hash_size
        self.tables = tables
        self.row_block = row_block
        self.weights = {}
        self.feature_to_table = {}
        self.table_row_offset = {}

        stacked = []
        row_offset = 0
        for i, (tname, cfg) in enumerate(tables.items()):
            E, D = cfg["num_embeddings"], cfg["embedding_dim"]
            nb = cfg["num_buckets"]
            assert E % nb == 0, "num_buckets must divide num_embeddings"
            bs = E // nb
            assert _is_pow2(nb) and _is_pow2(bs), (
                "power-of-two bucket configs required (see TODO for magic-number div)")
            assert D <= D_PAD
            k = jax.random.fold_in(key, i)
            w = jax.random.normal(k, (E, D), dtype=jnp.float32) * 0.02
            self.weights[tname] = w
            # lane-pad D -> 128 and stack all tables into one slab
            w_pad = jnp.zeros((E, D_PAD), jnp.float32).at[:, :D].set(w)
            stacked.append(w_pad)
            self.table_row_offset[tname] = row_offset
            row_offset += E
            for f in cfg["feature_names"]:
                self.feature_to_table[f] = tname
        self.stacked_table = jnp.concatenate(stacked, axis=0)
        self.remapped_ids = None

    def parameters(self):
        """Iterator over the EmbeddingCollection weights (not the MC modules)."""
        return iter(self.weights.values())

    def __call__(self, kjt):
        """kjt: dict feature_name -> {"values": [N_f] int32, "lengths": [B] int32}"""
        rb = self.row_block
        ids_chunks = []
        nb_mask_l, nb_log2_l, bs_mask_l, row_off_l = [], [], [], []
        feat_slices = {}
        remapped = {}
        start = 0
        for fname, jt in kjt.items():
            tname = self.feature_to_table[fname]
            cfg = self.tables[tname]
            nb = cfg["num_buckets"]
            bs = cfg["num_embeddings"] // nb
            values = jt["values"].astype(jnp.int32)
            n = values.shape[0]
            # pad each feature to a multiple of the row block so every grid
            # block belongs to exactly one table (padded rows sliced off below)
            n_pad = ((n + rb - 1) // rb) * rb
            padded = jnp.zeros((n_pad,), jnp.int32).at[:n].set(values)
            ids_chunks.append(padded)
            g = n_pad // rb
            nb_mask_l += [nb - 1] * g
            nb_log2_l += [int(math.log2(nb))] * g
            bs_mask_l += [bs - 1] * g
            row_off_l += [self.table_row_offset[tname]] * g
            feat_slices[fname] = (start, n, cfg["embedding_dim"])
            start += n_pad
            remapped[fname] = _remap_reference(values, nb, bs)

        ids_concat = jnp.concatenate(ids_chunks, axis=0)
        as_i32 = lambda xs: jnp.asarray(xs, dtype=jnp.int32)
        emb = mc_fused_lookup(
            ids_concat, as_i32(nb_mask_l), as_i32(nb_log2_l),
            as_i32(bs_mask_l), as_i32(row_off_l), self.stacked_table,
            row_block=rb)

        self.remapped_ids = remapped
        out = {}
        for fname, jt in kjt.items():
            s, n, d = feat_slices[fname]
            out[fname] = {"values": emb[s:s + n, :d], "lengths": jt["lengths"]}
        return out


if __name__ == "__main__":
    key = jax.random.PRNGKey(0)

    # Embedding configs (small, synthetic; power-of-two buckets).
    tables = {
        "table_a": {
            "num_embeddings": 64,   # zch_size
            "embedding_dim": 32,
            "feature_names": ["feat_a"],
            "num_buckets": 8,       # mpzch_num_buckets (divides zch_size)
        },
        "table_b": {
            "num_embeddings": 128,
            "embedding_dim": 16,
            "feature_names": ["feat_b"],
            "num_buckets": 16,
        },
    }
    input_hash_size = 10_000

    adapter = McEmbeddingCollectionAdapterJAX(tables, input_hash_size, key)

    # KeyedJaggedTensor of form [F x B x L], B = 2.
    kv = jax.random.split(key, 2)
    kjt = {
        "feat_a": {
            "values": jax.random.randint(
                kv[0], (8,), 0, input_hash_size, dtype=jnp.int32),
            "lengths": jnp.array([3, 5], dtype=jnp.int32),
        },
        "feat_b": {
            "values": jax.random.randint(
                kv[1], (8,), 0, input_hash_size, dtype=jnp.int32),
            "lengths": jnp.array([4, 4], dtype=jnp.int32),
        },
    }

    out = adapter(kjt)
    for fname, jt in out.items():
        vals = jax.block_until_ready(jt["values"])
        tname = adapter.feature_to_table[fname]
        cfg = tables[tname]
        assert vals.shape == (int(jt["lengths"].sum()), cfg["embedding_dim"])
        assert vals.dtype == jnp.float32
        # reference check: kernel gather must equal a plain-JAX table lookup
        expected = jnp.take(adapter.weights[tname],
                            adapter.remapped_ids[fname], axis=0)
        assert bool(jnp.array_equal(vals, expected)), f"mismatch for {fname}"

    print("KERNEL_OK")
</pallas_src>

<mosaic_0001>
module attributes {stable_mosaic.version = 11 : i64} {
  func.func @_mc_gather_kernel(%arg0: i32, %arg1: memref<128xi32, #tpu.memory_space<smem>>, %arg2: memref<2xi32, #tpu.memory_space<smem>>, %arg3: memref<2xi32, #tpu.memory_space<smem>>, %arg4: memref<2xi32, #tpu.memory_space<smem>>, %arg5: memref<2xi32, #tpu.memory_space<smem>>, %arg6: memref<192x128xf32, #tpu.memory_space<vmem>>, %arg7: memref<64x128xf32, #tpu.memory_space<vmem>>) attributes {dimension_semantics = [#tpu.dimension_semantics<parallel>], iteration_bounds = array<i64: 2>, scalar_prefetch = 5 : i64, scratch_operands = 0 : i64, tpu.core_type = #tpu.core_type<tc>, window_params = [{pipeline_mode = #tpu.pipeline_mode<synchronous>, transform_indices = @transform_0, window_bounds = array<i64: 192, 128>}, {transform_indices = @transform_1, window_bounds = array<i64: 64, 128>}]} {
    %0 = arith.index_cast %arg0 : i32 to index
    %1 = memref.load %arg2[%0] : memref<2xi32, #tpu.memory_space<smem>>
    %2 = arith.index_cast %arg0 : i32 to index
    %3 = memref.load %arg3[%2] : memref<2xi32, #tpu.memory_space<smem>>
    %4 = arith.index_cast %arg0 : i32 to index
    %5 = memref.load %arg4[%4] : memref<2xi32, #tpu.memory_space<smem>>
    %6 = arith.index_cast %arg0 : i32 to index
    %7 = memref.load %arg5[%6] : memref<2xi32, #tpu.memory_space<smem>>
    %c1_i32 = arith.constant 1 : i32
    %8 = arith.addi %5, %c1_i32 : i32
    %c64_i32 = arith.constant 64 : i32
    %9 = arith.muli %arg0, %c64_i32 : i32
    %c0_i32 = arith.constant 0 : i32
    %c64_i32_0 = arith.constant 64 : i32
    %10 = arith.addi %c0_i32, %c64_i32_0 : i32
    %c1_i32_1 = arith.constant 1 : i32
    scf.for %arg8 = %c0_i32 to %10 step %c1_i32_1  : i32 {
      %11 = arith.addi %9, %arg8 : i32
      %12 = arith.index_cast %11 : i32 to index
      %13 = memref.load %arg1[%12] : memref<128xi32, #tpu.memory_space<smem>>
      %c1103515245_i32 = arith.constant 1103515245 : i32
      %14 = arith.muli %13, %c1103515245_i32 : i32
      %c12345_i32 = arith.constant 12345 : i32
      %15 = arith.addi %14, %c12345_i32 : i32
      %c2147483647_i32 = arith.constant 2147483647 : i32
      %16 = arith.andi %15, %c2147483647_i32 : i32
      %17 = arith.andi %16, %1 : i32
      %18 = arith.shrsi %16, %3 : i32
      %19 = arith.andi %18, %5 : i32
      %20 = arith.muli %17, %8 : i32
      %21 = arith.addi %7, %20 : i32
      %22 = arith.addi %21, %19 : i32
      %23 = arith.index_cast %22 : i32 to index
      %c0 = arith.constant 0 : index
      %24 = vector.load %arg6[%23, %c0] : memref<192x128xf32, #tpu.memory_space<vmem>>, vector<1x128xf32>
      %25 = arith.index_cast %arg8 : i32 to index
      %c0_3 = arith.constant 0 : index
      %26 = vector.load %arg7[%25, %c0_3] : memref<64x128xf32, #tpu.memory_space<vmem>>, vector<1x128xf32>
      tpu.vector_store %arg7[%25, %c0_3], %24 {strides = array<i32>} : memref<64x128xf32, #tpu.memory_space<vmem>>, vector<1x128xf32>,
    }
    %c64_i32_2 = arith.constant 64 : i32
    return
  }
  func.func @transform_0(%arg0: i32, %arg1: memref<128xi32, #tpu.memory_space<smem>>, %arg2: memref<2xi32, #tpu.memory_space<smem>>, %arg3: memref<2xi32, #tpu.memory_space<smem>>, %arg4: memref<2xi32, #tpu.memory_space<smem>>, %arg5: memref<2xi32, #tpu.memory_space<smem>>) -> (i32, i32) {
    %c0_i32 = arith.constant 0 : i32
    %c0_i32_0 = arith.constant 0 : i32
    %c0_i32_1 = arith.constant 0 : i32
    return %c0_i32, %c0_i32_0 : i32, i32
  }
  func.func @transform_1(%arg0: i32, %arg1: memref<128xi32, #tpu.memory_space<smem>>, %arg2: memref<2xi32, #tpu.memory_space<smem>>, %arg3: memref<2xi32, #tpu.memory_space<smem>>, %arg4: memref<2xi32, #tpu.memory_space<smem>>, %arg5: memref<2xi32, #tpu.memory_space<smem>>) -> (i32, i32) {
    %c0_i32 = arith.constant 0 : i32
    %c0_i32_0 = arith.constant 0 : i32
    return %arg0, %c0_i32 : i32, i32
  }
}

</mosaic_0001>

<llo_original>
// kernel: tpu_custom_call.1
$region0: #{tpu_custom_call.1}
  #allocation0 [shape = 'u32[]', space=smem, size = 0x4, offset = 0x4, fixed_abs, tag = 'smem constant byte address 0x4 - core index']
  #allocation1 [shape = 'u32[72,128]{1,0:T(1,128)}', space=vmem, size = 0x9000, scoped, tag = 'internal scratch']
  #allocation2 [shape = 's32[1]{0}', space=sflag, size = 0x4, scoped, tag = 'scoped memory for tpu_custom_call.1']
  #allocation3 [shape = 'u8[512]{0}', space=smem, size = 0x200, scoped, tag = 'prefetched SMEM operand 0']
  #allocation4 [shape = 'u8[512]{0}', space=smem, size = 0x200, scoped, tag = 'prefetched SMEM operand 1']
  #allocation5 [shape = 'u8[512]{0}', space=smem, size = 0x200, scoped, tag = 'prefetched SMEM operand 2']
  #allocation6 [shape = 'u8[512]{0}', space=smem, size = 0x200, scoped, tag = 'prefetched SMEM operand 3']
  #allocation7 [shape = 'u8[512]{0}', space=smem, size = 0x200, scoped, tag = 'prefetched SMEM operand 4']
  %s0 = inlined_call_operand.hbm [shape: s32[128], index: 0, kind: input, shape index: {}]
  %s1 = inlined_call_operand.hbm [shape: s32[2], index: 1, kind: input, shape index: {}]
  %s2 = inlined_call_operand.vmem [shape: s32[2], index: 2, kind: input, shape index: {}]
  %s3 = inlined_call_operand.vmem [shape: s32[2], index: 3, kind: input, shape index: {}]
  %s4 = inlined_call_operand.vmem [shape: s32[2], index: 4, kind: input, shape index: {}]
  %s5 = inlined_call_operand.hbm [shape: f32[192,128], index: 5, kind: input, shape index: {}]
  %s6 = inlined_call_operand.hbm [shape: f32[128,128], index: 6, kind: output, shape index: {}]
  %s7 = sld [smem:[#allocation0]]
  $region48: #{tpu_custom_call.1} parent=0
    _
  %s9 = ssub.s32 1, %s7
  %s10 = scalar_select 0, %s9, %s7
  %s12 = sshll.u32 %s0, 4
  %s13 = int_to_ptr.hbm [resolvable:$true] %s12
  %15 = dma.hbm_to_smem %s13, 16, [#allocation3], [#allocation2]
  %s17 = sshll.u32 %s1, 4
  %s18 = int_to_ptr.hbm [resolvable:$true] %s17
  %20 = dma.hbm_to_smem %s18, 16, [#allocation4], [#allocation2]
  %s22 = sshll.u32 %s2, 4
  %s23 = int_to_ptr.vmem [resolvable:$true] %s22
  %25 = dma.vmem_to_smem %s23, 16, [#allocation5], [#allocation2]
  %s27 = sshll.u32 %s3, 4
  %s28 = int_to_ptr.vmem [resolvable:$true] %s27
  %30 = dma.vmem_to_smem %s28, 16, [#allocation6], [#allocation2]
  %s32 = sshll.u32 %s4, 4
  %s33 = int_to_ptr.vmem [resolvable:$true] %s32
  %35 = dma.vmem_to_smem %s33, 16, [#allocation7], [#allocation2]
  %37 = dma.done [#allocation2], 80
  %38 = sfence
  $region1: #{tpu_custom_call.1} parent=0
    #allocation8 [shape = 'u8[98304]{0}', space=vmem, size = 0x18000, scoped, tag = 'input window, operand 5, single buffered']
    #allocation9 [shape = 's32[2]{0}', space=sflag, size = 0x8, scoped, tag = 'scoped memory for tpu_custom_call.1']
    #allocation10 [shape = 's32[2]{0}', space=sflag, size = 0x8, scoped, tag = 'scoped memory for tpu_custom_call.1']
    #allocation11 [shape = 'u8[65536]{0}', space=vmem, size = 0x10000, scoped, tag = 'output window, operand 0']
    %39 = vsyncpa [#allocation9], 0
    %40 = vsyncpa [#allocation10], 0
    %s41 = scalar_lea.sflag [#allocation10], 1
    %42 = vsyncpa %s41, 0
    loop: start=0, step=1, limit=4
    $region2: #{tpu_custom_call.1} parent=1 // loop_pre_header
      _
    $region3: #{tpu_custom_call.1} parent=1 // loop_header
      %s44 = sphi 0, %s48
      %p45 = scmp.ge.s32.totalorder %s44, 4
      %s52 = sphi 0, %s52
      %s54 = sphi 0, %s52
      %s55 = sphi 0, %s54
      %s69 = sphi 0, %s55
      %s75 = sphi 0, %s77
      %s78 = sphi 0, %s75
      %s79 = sphi 0, %s78
      %s95 = sphi 0, %s79
    $region4: #{tpu_custom_call.1} parent=1 // loop_header_branch
      %47 = sbr.rel (%p45) target = $region8
    $region5: #{tpu_custom_call.1} parent=1 // loop_body
      %s49 = ssub.s32 %s44, 1
      %s50 = ssub.s32 %s44, 2
      %s51 = sadd.s32 %s44, 1
      %s53 = sadd.s32 %s52, 1
      %p56 = scmp.eq.s32.totalorder %s44, 1
      %p57 = scmp.ne.s32.totalorder %s52, %s54
      %p58 = scmp.eq.s32.totalorder %s44, 0
      %p59 = por %p57, %p58
      %p60 = scmp.ne.s32.totalorder %s52, %s54
      %p61 = scmp.eq.s32.totalorder %s49, 1
      %p62 = por %p60, %p61
      %p63 = scmp.ne.s32.totalorder %s54, %s55
      %p64 = scmp.eq.s32.totalorder %s49, 0
      %p65 = por %p63, %p64
      %p66 = scmp.ne.s32.totalorder %s54, %s55
      %p67 = scmp.eq.s32.totalorder %s50, 1
      %p68 = por %p66, %p67
      %p70 = scmp.ne.s32.totalorder %s55, %s69
      %p71 = scmp.eq.s32.totalorder %s50, 0
      %p72 = por %p70, %p71
      %s73 = ssub.s32 %s44, %s51
      %p74 = scmp.eq.s32.totalorder %s73, 0
      %s76 = sadd.s32 %s75, 1
      %s77 = scalar_select %p74, %s75, %s76
      %p80 = pneg %p74
      %p81 = scmp.eq.s32.totalorder %s44, 1
      %p82 = por %p80, %p81
      %p83 = scmp.ne.s32.totalorder %s75, %s78
      %p84 = scmp.eq.s32.totalorder %s44, 0
      %p85 = por %p83, %p84
      %p86 = scmp.ne.s32.totalorder %s75, %s78
      %p87 = scmp.eq.s32.totalorder %s49, 1
      %p88 = por %p86, %p87
      %p89 = scmp.ne.s32.totalorder %s78, %s79
      %p90 = scmp.eq.s32.totalorder %s49, 0
      %p91 = por %p89, %p90
      %p92 = scmp.ne.s32.totalorder %s78, %s79
      %p93 = scmp.eq.s32.totalorder %s50, 1
      %p94 = por %p92, %p93
      %p96 = scmp.ne.s32.totalorder %s79, %s95
      %p97 = scmp.eq.s32.totalorder %s50, 0
      %p98 = por %p96, %p97
      %p99 = scmp.le.s32.totalorder 1, %s44
      %p100 = scmp.lt.s32.totalorder %s44, 3
      %p101 = pnand %p99, %p100
      %p102 = pneg %p101
      // Predicated region
      $region9: #{tpu_custom_call.1} parent=5 // pred_check
        _
      $region10: #{tpu_custom_call.1} parent=5 // pred_check_branch
        %104 = sbr.rel (%p101) target = $region12
      $region11: #{tpu_custom_call.1} parent=5 // pred_region
        %s105 = ssub.s32 %s44, 1
        // Predicated region
        $region13: #{tpu_custom_call.1} parent=11 // pred_check
          %p106 = pneg %p65
        $region14: #{tpu_custom_call.1} parent=11 // pred_check_branch
          %108 = sbr.rel (%p106) target = $region16
        $region15: #{tpu_custom_call.1} parent=11 // pred_region
          %110 = vsyncadd [#allocation9], 0
          %s111 = sshll.u32 %s5, 4
          %s112 = int_to_ptr.hbm [resolvable:$true] %s111
          %s113 = sshll.u32 [#allocation8], 4
          %s114 = int_to_ptr.vmem [resolvable:$true] %s113
          %119 = dma.hbm_to_vmem [thread:$0]  %s112, 3072, %s114, [#allocation9], 128, 128, 8
        $region16: #{tpu_custom_call.1} parent=11 // pred_fallthru
          _
      $region12: #{tpu_custom_call.1} parent=5 // pred_fallthru
        _
      %p120 = scmp.lt.s32.totalorder %s44, 2
      // Predicated region
      $region17: #{tpu_custom_call.1} parent=5 // pred_check
        %p121 = pneg %p120
      $region18: #{tpu_custom_call.1} parent=5 // pred_check_branch
        %123 = sbr.rel (%p121) target = $region20
      $region19: #{tpu_custom_call.1} parent=5 // pred_region
        _
      $region20: #{tpu_custom_call.1} parent=5 // pred_fallthru
        _
      %p124 = scmp.le.s32.totalorder 1, %s44
      %p125 = scmp.lt.s32.totalorder %s44, 3
      %p126 = pnand %p124, %p125
      %p127 = pneg %p126
      // Predicated region
      $region21: #{tpu_custom_call.1} parent=5 // pred_check
        _
      $region22: #{tpu_custom_call.1} parent=5 // pred_check_branch
        %129 = sbr.rel (%p126) target = $region24
      $region23: #{tpu_custom_call.1} parent=5 // pred_region
        %s130 = ssub.s32 %s44, 1
        // Predicated region
        $region25: #{tpu_custom_call.1} parent=23 // pred_check
          %p131 = pneg %p65
        $region26: #{tpu_custom_call.1} parent=23 // pred_check_branch
          %133 = sbr.rel (%p131) target = $region28
        $region27: #{tpu_custom_call.1} parent=23 // pred_region
          %135 = dma.done [#allocation9], 3072
        $region28: #{tpu_custom_call.1} parent=23 // pred_fallthru
          _
        %p136 = pneg %p65
        %p137 = pneg %p62
        %p138 = pneg %p91
        %p139 = pneg %p88
        %s140 = sand.u32 %s78, 1
        %s141 = scalar_lea.sflag [#allocation10], %s140
        %s142 = sand.u32 %s78, 1
        %s143 = smul.addr %s142, 64
        %s144 = scalar_lea.vmem [#allocation11], %s143
        %s145 = smul.u32 8, %s49
        %s146 = sld [smem:[#allocation4 + %s49]]
        %s147 = sld [smem:[#allocation5 + %s49]]
        %s148 = sld [smem:[#allocation6 + %s49]]
        %s149 = sld [smem:[#allocation7 + %s49]]
        %s150 = sadd.s32 %s148, 1
        %s151 = smul.u32 %s49, 64
        loop: start=0, step=1, limit=64
        $region29: #{tpu_custom_call.1} parent=23 // loop_pre_header
          _
        $region30: #{tpu_custom_call.1} parent=23 // loop_header
          %s153 = sphi 0, %s157
          %p154 = scmp.ge.s32.totalorder %s153, 64
        $region31: #{tpu_custom_call.1} parent=23 // loop_header_branch
          %156 = sbr.rel (%p154) target = $region35
        $region32: #{tpu_custom_call.1} parent=23 // loop_body
          %s158 = sadd.s32 %s151, %s153
          %s159 = sld [smem:[#allocation3 + %s158]]
          %s160 = smul.u32 %s159, 1103515245
          %s161 = sadd.s32 %s160, 12345
          %s162 = sand.u32 %s161, 2147483647
          %s163 = sand.u32 %s162, %s146
          %s164 = sshra.s32 %s162, %s147
          %s165 = sand.u32 %s164, %s148
          %s166 = smul.u32 %s163, %s150
          %s167 = sadd.s32 %s149, %s166
          %s168 = sadd.s32 %s167, %s165
          %s169 = scalar_lea.vmem [#allocation8], %s168
          %v170 = vld [vmem:[%s169] sm:$0x1]
          %s171 = scalar_lea.vmem %s144, %s153 [#allocation11]
          %172 = vst [vmem:[%s171] sm:$0x1] %v170
        $region33: #{tpu_custom_call.1} parent=23 // loop_footer
          %s157 = sadd.s32 1, %s153
        $region34: #{tpu_custom_call.1} parent=23 // loop_footer_branch
          %152 = sbr.rel target = $region30
        $region35: #{tpu_custom_call.1} parent=23 // loop_exit
          _
        %s173 = sand.u32 %s78, 1
        %s174 = scalar_lea.sflag [#allocation10], %s173
        %s175 = sand.u32 %s78, 1
        %s176 = smul.addr %s175, 64
        %s177 = scalar_lea.vmem [#allocation11], %s176
        // Predicated region
        $region36: #{tpu_custom_call.1} parent=23 // pred_check
          %p178 = pneg %p88
        $region37: #{tpu_custom_call.1} parent=23 // pred_check_branch
          %180 = sbr.rel (%p178) target = $region39
        $region38: #{tpu_custom_call.1} parent=23 // pred_region
          %s181 = smul.u32 8, %s49
          %183 = vsyncadd %s174, 0
          %s184 = smul.addr %s181, 8
          %s185 = scalar_lea.hbm %s6, %s184
          %s186 = sshll.u32 %s177, 4
          %s187 = int_to_ptr.vmem [resolvable:$true] %s186
          %s188 = sshll.u32 %s185, 4
          %s189 = int_to_ptr.hbm [resolvable:$true] %s188
          %194 = dma.vmem_to_hbm [thread:$0]  %s187, 1024, %s189, %s174, 128, 128, 8
        $region39: #{tpu_custom_call.1} parent=23 // pred_fallthru
          _
      $region24: #{tpu_custom_call.1} parent=5 // pred_fallthru
        _
      %p195 = scmp.le.s32.totalorder 2, %s44
      // Predicated region
      $region40: #{tpu_custom_call.1} parent=5 // pred_check
        %p196 = pneg %p195
      $region41: #{tpu_custom_call.1} parent=5 // pred_check_branch
        %198 = sbr.rel (%p196) target = $region43
      $region42: #{tpu_custom_call.1} parent=5 // pred_region
        %s199 = ssub.s32 %s44, 2
        // Predicated region
        $region44: #{tpu_custom_call.1} parent=42 // pred_check
          %p200 = pneg %p94
        $region45: #{tpu_custom_call.1} parent=42 // pred_check_branch
          %202 = sbr.rel (%p200) target = $region47
        $region46: #{tpu_custom_call.1} parent=42 // pred_region
          %s203 = sand.u32 %s79, 1
          %s204 = scalar_lea.sflag [#allocation10], %s203
          %s205 = sand.u32 %s79, 1
          %s206 = smul.addr %s205, 64
          %s207 = scalar_lea.vmem [#allocation11], %s206
          %209 = dma.done %s204, 1024
        $region47: #{tpu_custom_call.1} parent=42 // pred_fallthru
          _
      $region43: #{tpu_custom_call.1} parent=5 // pred_fallthru
        _
    $region6: #{tpu_custom_call.1} parent=1 // loop_footer
      %s48 = sadd.s32 1, %s44
    $region7: #{tpu_custom_call.1} parent=1 // loop_footer_branch
      %43 = sbr.rel target = $region3
    $region8: #{tpu_custom_call.1} parent=1 // loop_exit
      _
    %210 = vsyncpa [#allocation9], 1
    %s211 = scalar_lea.sflag [#allocation9], 1
    %212 = vsyncpa %s211, 1
    %213 = vsyncpa [#allocation10], 1
    %s214 = scalar_lea.sflag [#allocation10], 1
    %215 = vsyncpa %s214, 1

</llo_original>
